<compile_context>
chip_gen: v7x
topology: tpu7x:2x2x1
jax: 0.10.0
libtpu: 0.0.40
codegen_flags: <defaults>
</compile_context>

<pallas_src>
import jax
import jax.numpy as jnp
from jax.experimental import pallas as pl
from jax.experimental.pallas import tpu as pltpu

SUBLANE = 8


def _round_up(x, m):
    return ((x + m - 1) // m) * m


def _basic_block_kernel(x_ref, w_ref, out_ref):
    """Single MXU pass: the entire composed 6-layer affine chain.

    x_ref:   (TILE_B, 8)  input features in cols [0:lw], col lw == 1.0 (bias pick)
    w_ref:   (8, 8)       composed weight; row lw holds the composed bias
    out_ref: (TILE_B, 8)  cols [0:fh] = y_hat, cols [fh:fh+lw] = x_hat
    """
    out_ref[...] = jnp.dot(
        x_ref[...], w_ref[...], preferred_element_type=jnp.float32
    ).astype(out_ref.dtype)


def pack_params(params, loopback_window=5, future_horizen=2,
                compute_dtype=jnp.float32):
    """Compose h1..h4 and the fused (y_hat | x_hat) heads into one weight.

    Exact affine composition, done once per parameter set in f32:
        W_total = W1 @ W2 @ W3 @ W4 @ [Wy | Wx]
        b_total = (((b1 @ W2 + b2) @ W3 + b3) @ W4 + b4) @ [Wy | Wx] + [by | bx]

    Packed layout (K = NOUT = 8):
        rows [0:lw]   input features          cols [0:fh]       y_hat
        row  lw       bias row                cols [fh:fh+lw]   x_hat
        rows lw+1..   zero padding            remaining cols    zero padding
    """
    lw, fh = loopback_window, future_horizen
    K = _round_up(lw + 1, SUBLANE)              # features + bias column (5+1 -> 8)
    nout_real = fh + lw
    NOUT = _round_up(nout_real, SUBLANE)        # 7 -> 8

    f32 = jnp.float32
    w_h = params["w1"].astype(f32)              # (lw, 8)
    b_h = params["b1"].astype(f32)              # (8,)
    for n in ("2", "3", "4"):
        w_h = w_h @ params["w" + n].astype(f32)
        b_h = b_h @ params["w" + n].astype(f32) + params["b" + n].astype(f32)

    w_head = jnp.concatenate([params["wy"].astype(f32),
                              params["wx"].astype(f32)], axis=1)   # (8, fh+lw)
    b_head = jnp.concatenate([params["by"].astype(f32),
                              params["bx"].astype(f32)])           # (fh+lw,)

    w_total = w_h @ w_head                       # (lw, fh+lw)
    b_total = b_h @ w_head + b_head              # (fh+lw,)

    w_all = jnp.zeros((K, NOUT), f32)
    w_all = w_all.at[:lw, :nout_real].set(w_total)
    w_all = w_all.at[lw, :nout_real].set(b_total)   # bias row
    return w_all.astype(compute_dtype)


def basic_block_forward(x, w_all, loopback_window=5, future_horizen=2,
                        tile_b=4096):
    """x: (batch, loopback_window) f32; w_all from pack_params. -> (y_hat, x_hat)."""
    batch, lw = x.shape
    assert lw == loopback_window
    K, NOUT = w_all.shape
    assert future_horizen + lw <= NOUT and lw < K

    # Batch tiling: multiples of 8.  Cap tile_b so the grid has >= 2 steps
    # when the batch allows -> both v7x TensorCores get work ("parallel" axis);
    # harmless on single-TC v5e/v6e.
    batch8 = _round_up(batch, SUBLANE)
    tile_b = _round_up(max(SUBLANE, min(tile_b, batch8)), SUBLANE)
    if batch8 >= 2 * SUBLANE:
        tile_b = min(tile_b, _round_up((batch8 + 1) // 2, SUBLANE))
    pad_batch = _round_up(batch, tile_b)
    grid = (pad_batch // tile_b,)

    # Input padded to K columns; column lw is the constant-1 bias column.
    x_pad = jnp.zeros((pad_batch, K), w_all.dtype)
    x_pad = x_pad.at[:batch, :lw].set(x.astype(w_all.dtype))
    x_pad = x_pad.at[:, lw].set(1.0)

    itemsize = jnp.dtype(w_all.dtype).itemsize
    cost = pl.CostEstimate(
        flops=2 * pad_batch * K * NOUT,
        transcendentals=0,
        bytes_accessed=pad_batch * K * itemsize      # x in
        + K * NOUT * itemsize                        # weight in
        + pad_batch * NOUT * 4,                      # f32 out
    )

    out = pl.pallas_call(
        _basic_block_kernel,
        out_shape=jax.ShapeDtypeStruct((pad_batch, NOUT), jnp.float32),
        grid=grid,
        in_specs=[
            pl.BlockSpec((tile_b, K), lambda i: (i, 0)),   # x tile
            pl.BlockSpec((K, NOUT), lambda i: (0, 0)),     # composed W (resident)
        ],
        out_specs=pl.BlockSpec((tile_b, NOUT), lambda i: (i, 0)),
        compiler_params=pltpu.CompilerParams(
            dimension_semantics=("parallel",)),
        cost_estimate=cost,
    )(x_pad, w_all)

    y_hat = out[:batch, :future_horizen]
    x_hat = out[:batch, future_horizen:future_horizen + lw]
    return y_hat, x_hat


def init_params(key, loopback_window=5, future_horizen=2):
    fc = [8, 8, 8, 8]
    dims = [(loopback_window, fc[0]), (fc[0], fc[1]), (fc[1], fc[2]),
            (fc[2], fc[3]), (fc[3], future_horizen), (fc[3], loopback_window)]
    names = ["1", "2", "3", "4", "y", "x"]
    params = {}
    for (din, dout), n in zip(dims, names):
        key, kw, kb = jax.random.split(key, 3)
        # PyTorch Linear default init: U(-1/sqrt(fan_in), 1/sqrt(fan_in)).
        bound = 1.0 / jnp.sqrt(jnp.float32(din))
        params["w" + n] = jax.random.uniform(kw, (din, dout), jnp.float32, -bound, bound)
        params["b" + n] = jax.random.uniform(kb, (dout,), jnp.float32, -bound, bound)
    return params


def _reference(x, params):
    h = x
    for n in ["1", "2", "3", "4"]:
        h = h @ params["w" + n] + params["b" + n]
    y = h @ params["wy"] + params["by"]
    xh = h @ params["wx"] + params["bx"]
    return y, xh


if __name__ == "__main__":
    loopback_window, future_horizen = 5, 2

    key = jax.random.PRNGKey(0)
    key, kx_small, kx_big = jax.random.split(key, 3)
    params = init_params(key, loopback_window, future_horizen)

    # Compose / pack once per parameter set (hoisted out of the per-call path).
    w_all_f32 = pack_params(params, loopback_window, future_horizen)
    w_all_bf16 = pack_params(params, loopback_window, future_horizen,
                             compute_dtype=jnp.bfloat16)

    # --- small batch, f32 (exact up to composition rounding) ---
    batch = 4
    x = jax.random.normal(kx_small, (batch, loopback_window), jnp.float32)
    y_hat, x_hat = basic_block_forward(x, w_all_f32, loopback_window, future_horizen)
    jax.block_until_ready((y_hat, x_hat))
    y_ref, x_ref = _reference(x, params)
    assert y_hat.shape == (batch, future_horizen)
    assert x_hat.shape == (batch, loopback_window)
    assert jnp.allclose(y_hat, y_ref, atol=1e-5), "y_hat mismatch (f32 small)"
    assert jnp.allclose(x_hat, x_ref, atol=1e-5), "x_hat mismatch (f32 small)"

    # --- larger batch, f32, multi-step grid (exercises the parallel batch axis) ---
    big = 512
    xb = jax.random.normal(kx_big, (big, loopback_window), jnp.float32)
    yb, xhb = basic_block_forward(xb, w_all_f32, loopback_window, future_horizen)
    jax.block_until_ready((yb, xhb))
    yb_ref, xhb_ref = _reference(xb, params)
    assert jnp.allclose(yb, yb_ref, atol=1e-5), "y_hat mismatch (f32 big)"
    assert jnp.allclose(xhb, xhb_ref, atol=1e-5), "x_hat mismatch (f32 big)"

    # --- bf16 MXU operands (f32 accumulation), loose tolerance ---
    yb16, xh16 = basic_block_forward(x, w_all_bf16, loopback_window, future_horizen)
    jax.block_until_ready((yb16, xh16))
    assert jnp.allclose(yb16, y_ref, rtol=5e-2, atol=5e-2), "y_hat mismatch (bf16)"
    assert jnp.allclose(xh16, x_ref, rtol=5e-2, atol=5e-2), "x_hat mismatch (bf16)"

    print("KERNEL_OK")
</pallas_src>

<mosaic_0001>
module attributes {stable_mosaic.version = 11 : i64} {
  func.func @_basic_block_kernel(%arg0: i32, %arg1: memref<8x8xf32, #tpu.memory_space<vmem>>, %arg2: memref<8x8xf32, #tpu.memory_space<vmem>>, %arg3: memref<8x8xf32, #tpu.memory_space<vmem>>) attributes {dimension_semantics = [#tpu.dimension_semantics<parallel>], iteration_bounds = array<i64: 1>, scalar_prefetch = 0 : i64, scratch_operands = 0 : i64, tpu.core_type = #tpu.core_type<tc>, window_params = [{transform_indices = @transform_0, window_bounds = array<i64: 8, 8>}, {pipeline_mode = #tpu.pipeline_mode<synchronous>, transform_indices = @transform_1, window_bounds = array<i64: 8, 8>}, {transform_indices = @transform_2, window_bounds = array<i64: 8, 8>}]} {
    %c0 = arith.constant 0 : index
    %c0_0 = arith.constant 0 : index
    %0 = vector.load %arg1[%c0, %c0_0] : memref<8x8xf32, #tpu.memory_space<vmem>>, vector<8x8xf32>
    %c0_1 = arith.constant 0 : index
    %c0_2 = arith.constant 0 : index
    %1 = vector.load %arg2[%c0_1, %c0_2] : memref<8x8xf32, #tpu.memory_space<vmem>>, vector<8x8xf32>
    %cst = arith.constant dense<0.000000e+00> : vector<8x8xf32>
    %2 = tpu.matmul %0, %1, %cst {dimension_numbers = #tpu.dot_dimension_numbers<[1], [0], [0], [1], [0, 0, 1, 1], [], []>} : vector<8x8xf32>, vector<8x8xf32>, vector<8x8xf32> -> vector<8x8xf32>
    %c0_3 = arith.constant 0 : index
    %c0_4 = arith.constant 0 : index
    %3 = vector.load %arg3[%c0_3, %c0_4] : memref<8x8xf32, #tpu.memory_space<vmem>>, vector<8x8xf32>
    tpu.vector_store %arg3[%c0_3, %c0_4], %2 {strides = array<i32>} : memref<8x8xf32, #tpu.memory_space<vmem>>, vector<8x8xf32>,
    return
  }
  func.func @transform_0(%arg0: i32) -> (i32, i32) {
    %c0_i32 = arith.constant 0 : i32
    %c0_i32_0 = arith.constant 0 : i32
    return %arg0, %c0_i32 : i32, i32
  }
  func.func @transform_1(%arg0: i32) -> (i32, i32) {
    %c0_i32 = arith.constant 0 : i32
    %c0_i32_0 = arith.constant 0 : i32
    %c0_i32_1 = arith.constant 0 : i32
    return %c0_i32, %c0_i32_0 : i32, i32
  }
  func.func @transform_2(%arg0: i32) -> (i32, i32) {
    %c0_i32 = arith.constant 0 : i32
    %c0_i32_0 = arith.constant 0 : i32
    return %arg0, %c0_i32 : i32, i32
  }
}

</mosaic_0001>

<llo_original>
// kernel: tpu_custom_call.1
$region0: #{tpu_custom_call.1}
  #allocation0 [shape = 'u32[]', space=smem, size = 0x4, offset = 0x4, fixed_abs, tag = 'smem constant byte address 0x4 - core index']
  #allocation1 [shape = 'u32[144,128]{1,0:T(1,128)}', space=vmem, size = 0x12000, scoped, tag = 'internal scratch']
  %s0 = inlined_call_operand.hbm [shape: f32[8,8], index: 0, kind: input, shape index: {}]
  %s1 = inlined_call_operand.hbm [shape: f32[8,8], index: 1, kind: input, shape index: {}]
  %s2 = inlined_call_operand.hbm [shape: f32[8,8], index: 2, kind: output, shape index: {}]
  %s3 = sld [smem:[#allocation0]]
  $region26: #{tpu_custom_call.1} parent=0
    _
  %s5 = ssub.s32 1, %s3
  %s6 = scalar_select 0, %s5, %s3
  $region1: #{tpu_custom_call.1} parent=0
    #allocation2 [shape = 'u8[4096]{0}', space=vmem, size = 0x1000, scoped, tag = 'input window, operand 0, single buffered']
    #allocation3 [shape = 's32[1]{0}', space=sflag, size = 0x4, scoped, tag = 'scoped memory for tpu_custom_call.1']
    #allocation4 [shape = 's32[1]{0}', space=sflag, size = 0x4, scoped, tag = 'scoped memory for tpu_custom_call.1']
    #allocation5 [shape = 'u8[4096]{0}', space=vmem, size = 0x1000, scoped, tag = 'input window, operand 1, single buffered']
    #allocation6 [shape = 's32[1]{0}', space=sflag, size = 0x4, scoped, tag = 'scoped memory for tpu_custom_call.1']
    #allocation7 [shape = 'u8[4096]{0}', space=vmem, size = 0x1000, scoped, tag = 'output window, operand 0, single buffered']
    %7 = vsyncpa [#allocation3], 0
    %8 = vsyncpa [#allocation6], 0
    %9 = vsyncpa [#allocation4], 0
    // Predicated region
    $region2: #{tpu_custom_call.1} parent=1 // pred_check
      _
    $region3: #{tpu_custom_call.1} parent=1 // pred_check_branch
      %11 = sbr.rel (0) target = $region5
    $region4: #{tpu_custom_call.1} parent=1 // pred_region
      %s13 = ssub.s32 128, 128
      %14 = vsyncadd [#allocation3], %s13
      %s16 = sshll.u32 [#allocation2], 4
      %s17 = int_to_ptr.vmem [resolvable:$true] %s16
      %19 = dma.hbm_to_vmem [thread:$0]  %s0, 128, %s17, [#allocation3]
    $region5: #{tpu_custom_call.1} parent=1 // pred_fallthru
      _
    // Predicated region
    $region6: #{tpu_custom_call.1} parent=1 // pred_check
      _
    $region7: #{tpu_custom_call.1} parent=1 // pred_check_branch
      %21 = sbr.rel (0) target = $region9
    $region8: #{tpu_custom_call.1} parent=1 // pred_region
      %s23 = ssub.s32 128, 128
      %24 = vsyncadd [#allocation6], %s23
      %s26 = sshll.u32 [#allocation5], 4
      %s27 = int_to_ptr.vmem [resolvable:$true] %s26
      %29 = dma.hbm_to_vmem [thread:$0]  %s1, 128, %s27, [#allocation6]
    $region9: #{tpu_custom_call.1} parent=1 // pred_fallthru
      _
    // Predicated region
    $region10: #{tpu_custom_call.1} parent=1 // pred_check
      _
    $region11: #{tpu_custom_call.1} parent=1 // pred_check_branch
      %31 = sbr.rel (0) target = $region13
    $region12: #{tpu_custom_call.1} parent=1 // pred_region
      %32 = dma.done [#allocation3], 128
    $region13: #{tpu_custom_call.1} parent=1 // pred_fallthru
      _
    // Predicated region
    $region14: #{tpu_custom_call.1} parent=1 // pred_check
      _
    $region15: #{tpu_custom_call.1} parent=1 // pred_check_branch
      %34 = sbr.rel (0) target = $region17
    $region16: #{tpu_custom_call.1} parent=1 // pred_region
      %35 = dma.done [#allocation6], 128
    $region17: #{tpu_custom_call.1} parent=1 // pred_fallthru
      _
    %v36 = vld [vmem:[#allocation2] sm:$0xff]
    %v37 = vld [vmem:[#allocation5] sm:$0xff]
    %vm38 = vcmask 64512
    %v40 = vsel %vm38, %v36, 0
    %42 = vmatprep.subr.mxu0 0.0
    %43 = vmatpush1.msra.mxu0 %v37
    %44 = vmatprep.subr.mxu0 0.0
    %45 = vmatpush1.msra.mxu0 0.0
    %46 = vmatprep.subr.mxu0 0.0
    %47 = vmatpush1.msra.mxu0 0.0
    %48 = vmatprep.subr.mxu0 0.0
    %49 = vmatpush1.msra.mxu0 0.0
    %50 = vmatprep.subr.mxu0 0.0
    %51 = vmatpush1.msra.mxu0 0.0
    %52 = vmatprep.subr.mxu0 0.0
    %53 = vmatpush1.msra.mxu0 0.0
    %54 = vmatprep.subr.mxu0 0.0
    %55 = vmatpush1.msra.mxu0 0.0
    %56 = vmatprep.subr.mxu0 0.0
    %57 = vmatpush1.msra.mxu0 0.0
    %58 = vmatprep.subr.mxu0 0.0
    %59 = vmatpush1.msra.mxu0 0.0
    %60 = vmatprep.subr.mxu0 0.0
    %61 = vmatpush1.msra.mxu0 0.0
    %62 = vmatprep.subr.mxu0 0.0
    %63 = vmatpush1.msra.mxu0 0.0
    %64 = vmatprep.subr.mxu0 0.0
    %65 = vmatpush1.msra.mxu0 0.0
    %66 = vmatprep.subr.mxu0 0.0
    %67 = vmatpush1.msra.mxu0 0.0
    %68 = vmatprep.subr.mxu0 0.0
    %69 = vmatpush1.msra.mxu0 0.0
    %70 = vmatprep.subr.mxu0 0.0
    %71 = vmatpush1.msra.mxu0 0.0
    %72 = vmatprep.subr.mxu0 0.0
    %73 = vmatpush1.msra.mxu0 0.0
    %74 = vmatprep.subr.mxu0 0.0
    %75 = vmatpush1.msra.mxu0 0.0
    %76 = vmatprep.subr.mxu0 0.0
    %77 = vmatpush1.msra.mxu0 0.0
    %78 = vmatprep.subr.mxu0 0.0
    %79 = vmatpush1.msra.mxu0 0.0
    %80 = vmatprep.subr.mxu0 0.0
    %81 = vmatpush1.msra.mxu0 0.0
    %82 = vmatprep.subr.mxu0 0.0
    %83 = vmatpush1.msra.mxu0 0.0
    %84 = vmatprep.subr.mxu0 0.0
    %85 = vmatpush1.msra.mxu0 0.0
    %86 = vmatprep.subr.mxu0 0.0
    %87 = vmatpush1.msra.mxu0 0.0
    %88 = vmatprep.subr.mxu0 0.0
    %89 = vmatpush1.msra.mxu0 0.0
    %90 = vmatprep.subr.mxu0 0.0
    %91 = vmatpush1.msra.mxu0 0.0
    %92 = vmatprep.subr.mxu0 0.0
    %93 = vmatpush1.msra.mxu0 0.0
    %94 = vmatprep.subr.mxu0 0.0
    %95 = vmatpush1.msra.mxu0 0.0
    %96 = vmatprep.subr.mxu0 0.0
    %97 = vmatpush1.msra.mxu0 0.0
    %98 = vmatprep.subr.mxu0 0.0
    %99 = vmatpush1.msra.mxu0 0.0
    %100 = vmatprep.subr.mxu0 0.0
    %101 = vmatpush1.msra.mxu0 0.0
    %102 = vmatprep.subr.mxu0 0.0
    %103 = vmatpush1.msra.mxu0 0.0
    %104 = vmatprep.subr.mxu0 0.0
    %105 = vmatpush1.msra.mxu0 0.0
    %106 = vmatprep.mubr.f32.mxu0 0.0
    %107 = vmatmul.mubr.f32.gmra.mrb[0].mxu0 %v40
    %v108 = vpop.f32.mrb[0].mxu0
    %v109 = vadd.f32 0.0, %v108
    %v110 = vpop.f32.mrb[0].mxu0
    %111 = vdwg.mxu0
    %112 = vst.msk [vmem:[#allocation7] sm:$0xff] %vm38, %v109
    // Predicated region
    $region18: #{tpu_custom_call.1} parent=1 // pred_check
      _
    $region19: #{tpu_custom_call.1} parent=1 // pred_check_branch
      %114 = sbr.rel (0) target = $region21
    $region20: #{tpu_custom_call.1} parent=1 // pred_region
      %s116 = ssub.s32 128, 128
      %117 = vsyncadd [#allocation4], %s116
      %s119 = sshll.u32 [#allocation7], 4
      %s120 = int_to_ptr.vmem [resolvable:$true] %s119
      %122 = dma.vmem_to_hbm [thread:$0]  %s120, 128, %s2, [#allocation4]
    $region21: #{tpu_custom_call.1} parent=1 // pred_fallthru
      _
    // Predicated region
    $region22: #{tpu_custom_call.1} parent=1 // pred_check
      _
    $region23: #{tpu_custom_call.1} parent=1 // pred_check_branch
      %124 = sbr.rel (0) target = $region25
    $region24: #{tpu_custom_call.1} parent=1 // pred_region
      %125 = dma.done [#allocation4], 128
    $region25: #{tpu_custom_call.1} parent=1 // pred_fallthru
      _
    %126 = vsyncpa [#allocation3], 1
    %127 = vsyncpa [#allocation6], 1
    %128 = vsyncpa [#allocation4], 1

</llo_original>
